<compile_context>
chip_gen: v7x
topology: tpu7x:2x2x1
jax: 0.10.0
libtpu: 0.0.40
codegen_flags: <defaults>
</compile_context>

<pallas_src>
import functools

import jax
import jax.numpy as jnp
from jax import lax
from jax.experimental import pallas as pl
from jax.experimental.pallas import tpu as pltpu

# VMEM planning: explicitly planned data buffers (double-buffered inputs and
# outputs) are budgeted to ~20 MiB and the Mosaic scoped-VMEM limit is raised
# to 32 MiB.  Both values are safe on every generation (v5e/v6e: 128 MiB
# physical VMEM, 16/32 MiB scoped default; v7x: 64 MiB physical, 32 MiB
# default scoped).
_DATA_VMEM_BUDGET = 20 * 1024 * 1024
_VMEM_LIMIT_BYTES = 32 * 1024 * 1024


def _round_up(v, m):
    return ((v + m - 1) // m) * m


def _n_acc_for(c):
    # Number of independent (C, 128) accumulators: enough ILP to fill the VALU
    # slots for small C without blowing the 64-vreg budget for large C.
    if c <= 32:
        return 4
    if c <= 128:
        return 2
    return 1


def _excite(mean_col, w1t, b1_row, w2, b2_col):
    """Tiny excitation MLP in column form (broadcast-mul + small reduces; no
    MXU, no in-kernel transposes).

    mean_col: (C, 1) f32 per-channel spatial mean.  Returns (C, 1) f32 gate.
    """
    h = jnp.sum(w1t * mean_col, axis=0, keepdims=True) + b1_row    # (1, Cr)
    h = jnp.where(h > 0.0, h, 0.01 * h)                            # LeakyReLU(0.01)
    y = jnp.sum(w2 * h, axis=1, keepdims=True) + b2_col            # (C, 1)
    return jax.nn.sigmoid(y)


# --------------------------------------------------------------------------
# Fused single-pass kernel: squeeze -> excite -> scale for one batch slab.
# --------------------------------------------------------------------------
def _fused_kernel(x_ref, w1t_ref, b1_ref, w2_ref, b2_ref, o_ref, *, inv_s):
    """x_ref / o_ref: (1, C, S) with the whole flattened spatial extent
    resident in VMEM.  1x HBM read + 1x HBM write per element."""
    C, S = x_ref.shape[1], x_ref.shape[2]
    n_full = S // 128
    rem = S - n_full * 128
    n_acc = _n_acc_for(C)

    # ---- squeeze: chunked lane-dense spatial sum, small accumulator tree ----
    accs = tuple(jnp.zeros((C, 128), jnp.float32) for _ in range(n_acc))
    n_iter = n_full // n_acc

    def body(i, carry):
        base = i * (128 * n_acc)
        new = []
        for j, a in enumerate(carry):
            off = pl.multiple_of(base + j * 128, 128)
            new.append(a + x_ref[0, :, pl.ds(off, 128)].astype(jnp.float32))
        return tuple(new)

    if n_iter > 0:
        accs = lax.fori_loop(0, n_iter, body, accs)
    total = accs[0]
    for a in accs[1:]:
        total = total + a
    for k in range(n_iter * n_acc, n_full):            # leftover full chunks
        total = total + x_ref[0, :, k * 128:(k + 1) * 128].astype(jnp.float32)
    col = jnp.sum(total, axis=-1, keepdims=True)       # (C, 1) cross-lane reduce
    if rem:                                            # ragged tail (< 128 lanes)
        col = col + jnp.sum(x_ref[0, :, n_full * 128:S].astype(jnp.float32),
                            axis=-1, keepdims=True)

    # ---- excite + scale ------------------------------------------------------
    g = _excite(col * inv_s, w1t_ref[...], b1_ref[...], w2_ref[...], b2_ref[...])
    o_ref[0] = (x_ref[0].astype(jnp.float32) * g).astype(o_ref.dtype)


# --------------------------------------------------------------------------
# Two-pass fallback, pass 1: tiled spatial reduction + per-batch excitation.
# --------------------------------------------------------------------------
def _reduce_excite_kernel(x_ref, w1t_ref, b1_ref, w2_ref, b2_ref, gate_ref,
                          *, inv_s, s_total, s_tile):
    """x_ref: (1, C, s_tile) lane-dense tile; gate_ref: (1, C, 1) output block
    that doubles as the resident f32 sum accumulator (S axis last,
    "arbitrary").  On the last S tile the excitation MLP overwrites the
    accumulator with the sigmoid gate."""
    s_idx = pl.program_id(1)

    @pl.when(s_idx == 0)
    def _init():
        gate_ref[...] = jnp.zeros_like(gate_ref)

    C = gate_ref.shape[1]
    n_chunks = s_tile // 128
    n_acc = min(_n_acc_for(C), n_chunks)
    needs_mask = (s_total % s_tile) != 0               # static: ragged last tile

    if needs_mask:
        lane = lax.broadcasted_iota(jnp.int32, (C, 128), 1)
        tile_base = s_idx * s_tile

    def load_chunk(k):
        v = x_ref[0, :, k * 128:(k + 1) * 128].astype(jnp.float32)
        if needs_mask:
            v = jnp.where(tile_base + (k * 128) + lane < s_total, v, 0.0)
        return v

    accs = [load_chunk(k) for k in range(n_acc)]
    for k in range(n_acc, n_chunks):
        accs[k % n_acc] = accs[k % n_acc] + load_chunk(k)
    total = accs[0]
    for a in accs[1:]:
        total = total + a
    gate_ref[0] += jnp.sum(total, axis=-1, keepdims=True)        # (C, 1)

    @pl.when(s_idx == pl.num_programs(1) - 1)
    def _finalize():
        gate_ref[0] = _excite(gate_ref[0] * inv_s, w1t_ref[...], b1_ref[...],
                              w2_ref[...], b2_ref[...])


# --------------------------------------------------------------------------
# Two-pass fallback, pass 2: out = x * gate.
# --------------------------------------------------------------------------
def _scale_kernel(gate_ref, x_ref, o_ref):
    """Gate stays a (C, 1) f32 column (no transpose) and broadcasts across the
    lane-dense spatial tile; the product is computed in f32 and cast once on
    the store.  Partial last blocks are clipped by Pallas."""
    g = gate_ref[0]                                               # (C, 1) f32
    o_ref[0] = (x_ref[0].astype(jnp.float32) * g).astype(o_ref.dtype)


def _pick_s_tile(S, C, itemsize, max_s_tile):
    """Lane-dense S tile for the two-pass path: a large multiple of 128,
    independent of whether it divides S (the ragged last tile is handled
    in-kernel), capped so pass-2's 2x input + 2x output buffers fit the
    VMEM budget."""
    c_pad = _round_up(C, 8)
    by_budget = _DATA_VMEM_BUDGET // (4 * c_pad * itemsize)
    t = min(max_s_tile, _round_up(S, 128), by_budget)
    return max(128, (t // 128) * 128)


def se_layer_3d(x, w1, b1, w2, b2, *, max_s_tile=2048, force_two_pass=False):
    """Squeeze-and-Excitation over a 3D volume (PyTorch SELayer3D forward).

    x : (B, C, D, H, W)
    w1: (Cr, C), b1: (Cr,)   -- torch nn.Linear(channel, channel // reduction)
    w2: (C, Cr), b2: (C,)    -- torch nn.Linear(channel // reduction, channel)
    """
    B, C, D, H, W = x.shape
    S = D * H * W
    Cr = w1.shape[0]
    inv_s = 1.0 / float(S)

    # No host-side padding: ragged spatial sizes are masked / clipped in-kernel.
    x_flat = x.reshape(B, C, S)

    # Column-form f32 parameters: no transposes inside the kernels.
    w1_t = jnp.asarray(w1, jnp.float32).T                # (C, Cr)
    b1_r = jnp.asarray(b1, jnp.float32).reshape(1, Cr)
    w2_f = jnp.asarray(w2, jnp.float32)                  # (C, Cr)
    b2_c = jnp.asarray(b2, jnp.float32).reshape(C, 1)

    itemsize = x.dtype.itemsize
    slab_bytes = _round_up(C, 8) * _round_up(S, 128) * itemsize   # one (C,S) buf

    # ---- fused single-pass path (1 read + 1 write of x) ---------------------
    if (not force_two_pass) and 4 * slab_bytes <= _DATA_VMEM_BUDGET:
        out_flat = pl.pallas_call(
            functools.partial(_fused_kernel, inv_s=inv_s),
            out_shape=jax.ShapeDtypeStruct((B, C, S), x.dtype),
            grid_spec=pltpu.PrefetchScalarGridSpec(
                num_scalar_prefetch=0,
                grid=(B,),
                in_specs=[
                    pl.BlockSpec((1, C, S), lambda b: (b, 0, 0)),
                    pl.BlockSpec((C, Cr), lambda b: (0, 0)),
                    pl.BlockSpec((1, Cr), lambda b: (0, 0)),
                    pl.BlockSpec((C, Cr), lambda b: (0, 0)),
                    pl.BlockSpec((C, 1), lambda b: (0, 0)),
                ],
                out_specs=pl.BlockSpec((1, C, S), lambda b: (b, 0, 0)),
            ),
            compiler_params=pltpu.CompilerParams(
                dimension_semantics=("parallel",),
                vmem_limit_bytes=_VMEM_LIMIT_BYTES),
        )(x_flat, w1_t, b1_r, w2_f, b2_c)
        return out_flat.reshape(B, C, D, H, W)

    # ---- two-pass fallback for volumes too large to keep resident -----------
    s_tile = _pick_s_tile(S, C, itemsize, max_s_tile)
    n_s = pl.cdiv(S, s_tile)
    grid = (B, n_s)

    gates = pl.pallas_call(
        functools.partial(_reduce_excite_kernel, inv_s=inv_s, s_total=S,
                          s_tile=s_tile),
        out_shape=jax.ShapeDtypeStruct((B, C, 1), jnp.float32),
        grid_spec=pltpu.PrefetchScalarGridSpec(
            num_scalar_prefetch=0,
            grid=grid,
            in_specs=[
                pl.BlockSpec((1, C, s_tile), lambda b, s: (b, 0, s)),
                pl.BlockSpec((C, Cr), lambda b, s: (0, 0)),
                pl.BlockSpec((1, Cr), lambda b, s: (0, 0)),
                pl.BlockSpec((C, Cr), lambda b, s: (0, 0)),
                pl.BlockSpec((C, 1), lambda b, s: (0, 0)),
            ],
            out_specs=pl.BlockSpec((1, C, 1), lambda b, s: (b, 0, 0)),
        ),
        compiler_params=pltpu.CompilerParams(
            dimension_semantics=("parallel", "arbitrary"),
            vmem_limit_bytes=_VMEM_LIMIT_BYTES),
    )(x_flat, w1_t, b1_r, w2_f, b2_c)

    # TODO(synk): on v7x with B == 1, pass 1 uses a single TensorCore; a split-
    # reduction middle grid axis (two partial (C,1) accumulators combined in
    # pass 2) would recover the idle core for the squeeze pass.

    out_flat = pl.pallas_call(
        _scale_kernel,
        out_shape=jax.ShapeDtypeStruct((B, C, S), x.dtype),
        grid_spec=pltpu.PrefetchScalarGridSpec(
            num_scalar_prefetch=0,
            grid=grid,
            in_specs=[
                pl.BlockSpec((1, C, 1), lambda b, s: (b, 0, 0)),
                pl.BlockSpec((1, C, s_tile), lambda b, s: (b, 0, s)),
            ],
            out_specs=pl.BlockSpec((1, C, s_tile), lambda b, s: (b, 0, s)),
        ),
        compiler_params=pltpu.CompilerParams(
            dimension_semantics=("parallel", "parallel"),
            vmem_limit_bytes=_VMEM_LIMIT_BYTES),
    )(gates, x_flat)
    return out_flat.reshape(B, C, D, H, W)


def _reference(x, w1, b1, w2, b2):
    # pure-JAX reference mirroring the PyTorch forward
    y = jnp.mean(x, axis=(2, 3, 4))                  # (B, C)
    y = y @ w1.T + b1                                # (B, Cr)
    y = jnp.where(y > 0, y, 0.01 * y)                # LeakyReLU(0.01)
    y = y @ w2.T + b2                                # (B, C)
    y = jax.nn.sigmoid(y)
    return x * y[:, :, None, None, None]


if __name__ == "__main__":
    key = jax.random.PRNGKey(0)

    def init_params(k, c, r):
        cr = max(1, c // r)
        k1, k2, k3, k4 = jax.random.split(k, 4)
        w1 = 0.1 * jax.random.normal(k1, (cr, c), dtype=jnp.float32)
        b1 = 0.1 * jax.random.normal(k2, (cr,), dtype=jnp.float32)
        w2 = 0.1 * jax.random.normal(k3, (c, cr), dtype=jnp.float32)
        b2 = 0.1 * jax.random.normal(k4, (c,), dtype=jnp.float32)
        return w1, b1, w2, b2

    # Case 1: lane-aligned spatial size (S = 1024) -> fused path + forced
    # two-pass path (aligned tiles).
    kx, kp, key = jax.random.split(key, 3)
    x1 = jax.random.normal(kx, (2, 64, 8, 8, 16), dtype=jnp.float32)
    p1 = init_params(kp, 64, 16)
    ref1 = _reference(x1, *p1)
    out1f = jax.block_until_ready(se_layer_3d(x1, *p1))
    out1t = jax.block_until_ready(
        se_layer_3d(x1, *p1, force_two_pass=True, max_s_tile=512))
    assert out1f.shape == x1.shape
    assert jnp.allclose(out1f, ref1, atol=1e-5, rtol=1e-5), "fused aligned"
    assert jnp.allclose(out1t, ref1, atol=1e-5, rtol=1e-5), "two-pass aligned"

    # Case 2: ragged spatial size (S = 315, not a multiple of 128) -> exercises
    # in-kernel tail masking and partial last blocks on both paths.
    kx, kp, key = jax.random.split(key, 3)
    x2 = jax.random.normal(kx, (1, 32, 5, 7, 9), dtype=jnp.float32)
    p2 = init_params(kp, 32, 16)
    ref2 = _reference(x2, *p2)
    out2f = jax.block_until_ready(se_layer_3d(x2, *p2))
    out2t = jax.block_until_ready(
        se_layer_3d(x2, *p2, force_two_pass=True, max_s_tile=256))
    assert out2f.shape == x2.shape
    assert jnp.allclose(out2f, ref2, atol=1e-5, rtol=1e-5), "fused ragged"
    assert jnp.allclose(out2t, ref2, atol=1e-5, rtol=1e-5), "two-pass ragged"

    print("KERNEL_OK")
</pallas_src>

<mosaic_0001>
module attributes {stable_mosaic.version = 11 : i64} {
  func.func @_fused_kernel(%arg0: i32, %arg1: memref<1x64x1024xf32, #tpu.memory_space<vmem>>, %arg2: memref<64x4xf32, #tpu.memory_space<vmem>>, %arg3: memref<1x4xf32, #tpu.memory_space<vmem>>, %arg4: memref<64x4xf32, #tpu.memory_space<vmem>>, %arg5: memref<64x1xf32, #tpu.memory_space<vmem>>, %arg6: memref<1x64x1024xf32, #tpu.memory_space<vmem>>) attributes {dimension_semantics = [#tpu.dimension_semantics<parallel>], iteration_bounds = array<i64: 2>, scalar_prefetch = 0 : i64, scratch_operands = 0 : i64, tpu.core_type = #tpu.core_type<tc>, window_params = [{transform_indices = @transform_0, window_bounds = array<i64: 1, 64, 1024>}, {pipeline_mode = #tpu.pipeline_mode<synchronous>, transform_indices = @transform_1, window_bounds = array<i64: 64, 4>}, {pipeline_mode = #tpu.pipeline_mode<synchronous>, transform_indices = @transform_2, window_bounds = array<i64: 1, 4>}, {pipeline_mode = #tpu.pipeline_mode<synchronous>, transform_indices = @transform_3, window_bounds = array<i64: 64, 4>}, {pipeline_mode = #tpu.pipeline_mode<synchronous>, transform_indices = @transform_4, window_bounds = array<i64: 64, 1>}, {transform_indices = @transform_5, window_bounds = array<i64: 1, 64, 1024>}]} {
    %cst = arith.constant 0.000000e+00 : f32
    %0 = vector.broadcast %cst : f32 to vector<64x128xf32>
    %cst_0 = arith.constant 0.000000e+00 : f32
    %1 = vector.broadcast %cst_0 : f32 to vector<64x128xf32>
    %c0_i32 = arith.constant 0 : i32
    %c4_i32 = arith.constant 4 : i32
    %2 = arith.addi %c0_i32, %c4_i32 : i32
    %c1_i32 = arith.constant 1 : i32
    %3:2 = scf.for %arg7 = %c0_i32 to %2 step %c1_i32 iter_args(%arg8 = %0, %arg9 = %1) -> (vector<64x128xf32>, vector<64x128xf32>)  : i32 {
      %c256_i32 = arith.constant 256 : i32
      %40 = arith.muli %arg7, %c256_i32 : i32
      %c0_i32_22 = arith.constant 0 : i32
      %41 = arith.addi %40, %c0_i32_22 : i32
      %42 = tpu.assume_multiple %41, 128 : i32
      %c0_23 = arith.constant 0 : index
      %c0_24 = arith.constant 0 : index
      %43 = arith.index_cast %42 : i32 to index
      %44 = vector.load %arg1[%c0_23, %c0_24, %43] : memref<1x64x1024xf32, #tpu.memory_space<vmem>>, vector<1x64x128xf32>
      %45 = vector.shape_cast %44 : vector<1x64x128xf32> to vector<64x128xf32>
      %46 = arith.addf %arg8, %45 : vector<64x128xf32>
      %c128_i32 = arith.constant 128 : i32
      %47 = arith.addi %40, %c128_i32 : i32
      %48 = tpu.assume_multiple %47, 128 : i32
      %c0_25 = arith.constant 0 : index
      %c0_26 = arith.constant 0 : index
      %49 = arith.index_cast %48 : i32 to index
      %50 = vector.load %arg1[%c0_25, %c0_26, %49] : memref<1x64x1024xf32, #tpu.memory_space<vmem>>, vector<1x64x128xf32>
      %51 = vector.shape_cast %50 : vector<1x64x128xf32> to vector<64x128xf32>
      %52 = arith.addf %arg9, %51 : vector<64x128xf32>
      scf.yield %46, %52 : vector<64x128xf32>, vector<64x128xf32>
    }
    %c4_i32_1 = arith.constant 4 : i32
    %4 = arith.addf %3#0, %3#1 : vector<64x128xf32>
    %cst_2 = arith.constant dense<0.000000e+00> : vector<64xf32>
    %5 = vector.multi_reduction <add>, %4, %cst_2 [1] : vector<64x128xf32> to vector<64xf32>
    %6 = vector.shape_cast %5 : vector<64xf32> to vector<64x1xf32>
    %cst_3 = arith.constant 9.765625E-4 : f32
    %7 = vector.broadcast %cst_3 : f32 to vector<64x1xf32>
    %8 = arith.mulf %6, %7 : vector<64x1xf32>
    %c0 = arith.constant 0 : index
    %c0_4 = arith.constant 0 : index
    %9 = vector.load %arg2[%c0, %c0_4] : memref<64x4xf32, #tpu.memory_space<vmem>>, vector<64x4xf32>
    %c0_5 = arith.constant 0 : index
    %c0_6 = arith.constant 0 : index
    %10 = vector.load %arg3[%c0_5, %c0_6] : memref<1x4xf32, #tpu.memory_space<vmem>>, vector<1x4xf32>
    %c0_7 = arith.constant 0 : index
    %c0_8 = arith.constant 0 : index
    %11 = vector.load %arg4[%c0_7, %c0_8] : memref<64x4xf32, #tpu.memory_space<vmem>>, vector<64x4xf32>
    %c0_9 = arith.constant 0 : index
    %c0_10 = arith.constant 0 : index
    %12 = vector.load %arg5[%c0_9, %c0_10] : memref<64x1xf32, #tpu.memory_space<vmem>>, vector<64x1xf32>
    %13 = vector.broadcast %8 : vector<64x1xf32> to vector<64x4xf32>
    %14 = arith.mulf %9, %13 : vector<64x4xf32>
    %cst_11 = arith.constant dense<0.000000e+00> : vector<4xf32>
    %15 = vector.multi_reduction <add>, %14, %cst_11 [0] : vector<64x4xf32> to vector<4xf32>
    %16 = vector.shape_cast %15 : vector<4xf32> to vector<1x4xf32>
    %17 = arith.addf %16, %10 : vector<1x4xf32>
    %cst_12 = arith.constant 0.000000e+00 : f32
    %18 = vector.broadcast %cst_12 : f32 to vector<1x4xf32>
    %19 = arith.cmpf ogt, %17, %18 : vector<1x4xf32>
    %cst_13 = arith.constant 0.00999999977 : f32
    %20 = vector.broadcast %cst_13 : f32 to vector<1x4xf32>
    %21 = arith.mulf %20, %17 : vector<1x4xf32>
    %22 = arith.select %19, %17, %21 : vector<1x4xi1>, vector<1x4xf32>
    %23 = vector.broadcast %22 : vector<1x4xf32> to vector<64x4xf32>
    %24 = arith.mulf %11, %23 : vector<64x4xf32>
    %cst_14 = arith.constant dense<0.000000e+00> : vector<64xf32>
    %25 = vector.multi_reduction <add>, %24, %cst_14 [1] : vector<64x4xf32> to vector<64xf32>
    %26 = vector.shape_cast %25 : vector<64xf32> to vector<64x1xf32>
    %27 = arith.addf %26, %12 : vector<64x1xf32>
    %28 = arith.negf %27 : vector<64x1xf32>
    %29 = math.exp %28 : vector<64x1xf32>
    %cst_15 = arith.constant 1.000000e+00 : f32
    %30 = vector.broadcast %cst_15 : f32 to vector<64x1xf32>
    %31 = arith.addf %30, %29 : vector<64x1xf32>
    %32 = arith.divf %30, %31 : vector<64x1xf32>
    %c0_16 = arith.constant 0 : index
    %c0_17 = arith.constant 0 : index
    %c0_18 = arith.constant 0 : index
    %33 = vector.load %arg1[%c0_16, %c0_17, %c0_18] : memref<1x64x1024xf32, #tpu.memory_space<vmem>>, vector<1x64x1024xf32>
    %34 = vector.shape_cast %33 : vector<1x64x1024xf32> to vector<64x1024xf32>
    %35 = vector.broadcast %32 : vector<64x1xf32> to vector<64x1024xf32>
    %36 = arith.mulf %34, %35 : vector<64x1024xf32>
    %c0_19 = arith.constant 0 : index
    %c0_20 = arith.constant 0 : index
    %c0_21 = arith.constant 0 : index
    %37 = vector.load %arg6[%c0_19, %c0_20, %c0_21] : memref<1x64x1024xf32, #tpu.memory_space<vmem>>, vector<1x64x1024xf32>
    %38 = vector.shape_cast %37 : vector<1x64x1024xf32> to vector<64x1024xf32>
    %39 = vector.shape_cast %36 : vector<64x1024xf32> to vector<1x64x1024xf32>
    tpu.vector_store %arg6[%c0_19, %c0_20, %c0_21], %39 {strides = array<i32>} : memref<1x64x1024xf32, #tpu.memory_space<vmem>>, vector<1x64x1024xf32>,
    return
  }
  func.func @transform_0(%arg0: i32) -> (i32, i32, i32) {
    %c0_i32 = arith.constant 0 : i32
    %c0_i32_0 = arith.constant 0 : i32
    %c0_i32_1 = arith.constant 0 : i32
    return %arg0, %c0_i32, %c0_i32_0 : i32, i32, i32
  }
  func.func @transform_1(%arg0: i32) -> (i32, i32) {
    %c0_i32 = arith.constant 0 : i32
    %c0_i32_0 = arith.constant 0 : i32
    %c0_i32_1 = arith.constant 0 : i32
    return %c0_i32, %c0_i32_0 : i32, i32
  }
  func.func @transform_2(%arg0: i32) -> (i32, i32) {
    %c0_i32 = arith.constant 0 : i32
    %c0_i32_0 = arith.constant 0 : i32
    %c0_i32_1 = arith.constant 0 : i32
    return %c0_i32, %c0_i32_0 : i32, i32
  }
  func.func @transform_3(%arg0: i32) -> (i32, i32) {
    %c0_i32 = arith.constant 0 : i32
    %c0_i32_0 = arith.constant 0 : i32
    %c0_i32_1 = arith.constant 0 : i32
    return %c0_i32, %c0_i32_0 : i32, i32
  }
  func.func @transform_4(%arg0: i32) -> (i32, i32) {
    %c0_i32 = arith.constant 0 : i32
    %c0_i32_0 = arith.constant 0 : i32
    %c0_i32_1 = arith.constant 0 : i32
    return %c0_i32, %c0_i32_0 : i32, i32
  }
  func.func @transform_5(%arg0: i32) -> (i32, i32, i32) {
    %c0_i32 = arith.constant 0 : i32
    %c0_i32_0 = arith.constant 0 : i32
    %c0_i32_1 = arith.constant 0 : i32
    return %arg0, %c0_i32, %c0_i32_0 : i32, i32, i32
  }
}

</mosaic_0001>

<llo_original>
// kernel: tpu_custom_call.1
$region0: #{tpu_custom_call.1}
  #allocation0 [shape = 'u32[]', space=smem, size = 0x4, offset = 0x4, fixed_abs, tag = 'smem constant byte address 0x4 - core index']
  #allocation1 [shape = 'u32[144,128]{1,0:T(1,128)}', space=vmem, size = 0x12000, scoped, tag = 'internal scratch']
  %s0 = inlined_call_operand.hbm [shape: f32[2,64,1024], index: 0, kind: input, shape index: {}]
  %s1 = inlined_call_operand.vmem [shape: f32[64,4], index: 1, kind: input, shape index: {}]
  %s2 = inlined_call_operand.vmem [shape: f32[1,4], index: 2, kind: input, shape index: {}]
  %s3 = inlined_call_operand.vmem [shape: f32[64,4], index: 3, kind: input, shape index: {}]
  %s4 = inlined_call_operand.vmem [shape: f32[64,1], index: 4, kind: input, shape index: {}]
  %s5 = inlined_call_operand.hbm [shape: f32[2,64,1024], index: 5, kind: output, shape index: {}]
  %s6 = sld [smem:[#allocation0]]
  $region64: #{tpu_custom_call.1} parent=0
    _
  %s8 = ssub.s32 1, %s6
  %s9 = scalar_select 0, %s8, %s6
  $region1: #{tpu_custom_call.1} parent=0
    #allocation2 [shape = 'u8[524288]{0}', space=vmem, size = 0x80000, scoped, tag = 'input window, operand 0']
    #allocation3 [shape = 's32[2]{0}', space=sflag, size = 0x8, scoped, tag = 'scoped memory for tpu_custom_call.1']
    #allocation4 [shape = 's32[2]{0}', space=sflag, size = 0x8, scoped, tag = 'scoped memory for tpu_custom_call.1']
    #allocation5 [shape = 'u8[524288]{0}', space=vmem, size = 0x80000, scoped, tag = 'output window, operand 0']
    %10 = vsyncpa [#allocation3], 0
    %s11 = scalar_lea.sflag [#allocation3], 1
    %12 = vsyncpa %s11, 0
    %13 = vsyncpa [#allocation4], 0
    %s14 = scalar_lea.sflag [#allocation4], 1
    %15 = vsyncpa %s14, 0
    loop: start=0, step=1, limit=4
    $region2: #{tpu_custom_call.1} parent=1 // loop_pre_header
      _
    $region3: #{tpu_custom_call.1} parent=1 // loop_header
      %s17 = sphi 0, %s21
      %p18 = scmp.ge.s32.totalorder %s17, 4
      %s27 = sphi 0, %s29
      %s30 = sphi 0, %s27
      %s31 = sphi 0, %s30
      %s47 = sphi 0, %s31
      %s51 = sphi 0, %s51
      %s53 = sphi 0, %s51
      %s54 = sphi 0, %s53
      %s68 = sphi 0, %s54
      %s72 = sphi 0, %s72
      %s74 = sphi 0, %s72
      %s75 = sphi 0, %s74
      %s89 = sphi 0, %s75
      %s93 = sphi 0, %s93
      %s95 = sphi 0, %s93
      %s96 = sphi 0, %s95
      %s110 = sphi 0, %s96
      %s114 = sphi 0, %s114
      %s116 = sphi 0, %s114
      %s117 = sphi 0, %s116
      %s131 = sphi 0, %s117
      %s137 = sphi 0, %s139
      %s140 = sphi 0, %s137
      %s141 = sphi 0, %s140
      %s157 = sphi 0, %s141
    $region4: #{tpu_custom_call.1} parent=1 // loop_header_branch
      %20 = sbr.rel (%p18) target = $region8
    $region5: #{tpu_custom_call.1} parent=1 // loop_body
      %s22 = ssub.s32 %s17, 1
      %s23 = ssub.s32 %s17, 2
      %s24 = sadd.s32 %s17, 1
      %s25 = ssub.s32 %s17, %s24
      %p26 = scmp.eq.s32.totalorder %s25, 0
      %s28 = sadd.s32 %s27, 1
      %s29 = scalar_select %p26, %s27, %s28
      %p32 = pneg %p26
      %p33 = scmp.eq.s32.totalorder %s17, 1
      %p34 = por %p32, %p33
      %p35 = scmp.ne.s32.totalorder %s27, %s30
      %p36 = scmp.eq.s32.totalorder %s17, 0
      %p37 = por %p35, %p36
      %p38 = scmp.ne.s32.totalorder %s27, %s30
      %p39 = scmp.eq.s32.totalorder %s22, 1
      %p40 = por %p38, %p39
      %p41 = scmp.ne.s32.totalorder %s30, %s31
      %p42 = scmp.eq.s32.totalorder %s22, 0
      %p43 = por %p41, %p42
      %p44 = scmp.ne.s32.totalorder %s30, %s31
      %p45 = scmp.eq.s32.totalorder %s23, 1
      %p46 = por %p44, %p45
      %p48 = scmp.ne.s32.totalorder %s31, %s47
      %p49 = scmp.eq.s32.totalorder %s23, 0
      %p50 = por %p48, %p49
      %s52 = sadd.s32 %s51, 1
      %p55 = scmp.eq.s32.totalorder %s17, 1
      %p56 = scmp.ne.s32.totalorder %s51, %s53
      %p57 = scmp.eq.s32.totalorder %s17, 0
      %p58 = por %p56, %p57
      %p59 = scmp.ne.s32.totalorder %s51, %s53
      %p60 = scmp.eq.s32.totalorder %s22, 1
      %p61 = por %p59, %p60
      %p62 = scmp.ne.s32.totalorder %s53, %s54
      %p63 = scmp.eq.s32.totalorder %s22, 0
      %p64 = por %p62, %p63
      %p65 = scmp.ne.s32.totalorder %s53, %s54
      %p66 = scmp.eq.s32.totalorder %s23, 1
      %p67 = por %p65, %p66
      %p69 = scmp.ne.s32.totalorder %s54, %s68
      %p70 = scmp.eq.s32.totalorder %s23, 0
      %p71 = por %p69, %p70
      %s73 = sadd.s32 %s72, 1
      %p76 = scmp.eq.s32.totalorder %s17, 1
      %p77 = scmp.ne.s32.totalorder %s72, %s74
      %p78 = scmp.eq.s32.totalorder %s17, 0
      %p79 = por %p77, %p78
      %p80 = scmp.ne.s32.totalorder %s72, %s74
      %p81 = scmp.eq.s32.totalorder %s22, 1
      %p82 = por %p80, %p81
      %p83 = scmp.ne.s32.totalorder %s74, %s75
      %p84 = scmp.eq.s32.totalorder %s22, 0
      %p85 = por %p83, %p84
      %p86 = scmp.ne.s32.totalorder %s74, %s75
      %p87 = scmp.eq.s32.totalorder %s23, 1
      %p88 = por %p86, %p87
      %p90 = scmp.ne.s32.totalorder %s75, %s89
      %p91 = scmp.eq.s32.totalorder %s23, 0
      %p92 = por %p90, %p91
      %s94 = sadd.s32 %s93, 1
      %p97 = scmp.eq.s32.totalorder %s17, 1
      %p98 = scmp.ne.s32.totalorder %s93, %s95
      %p99 = scmp.eq.s32.totalorder %s17, 0
      %p100 = por %p98, %p99
      %p101 = scmp.ne.s32.totalorder %s93, %s95
      %p102 = scmp.eq.s32.totalorder %s22, 1
      %p103 = por %p101, %p102
      %p104 = scmp.ne.s32.totalorder %s95, %s96
      %p105 = scmp.eq.s32.totalorder %s22, 0
      %p106 = por %p104, %p105
      %p107 = scmp.ne.s32.totalorder %s95, %s96
      %p108 = scmp.eq.s32.totalorder %s23, 1
      %p109 = por %p107, %p108
      %p111 = scmp.ne.s32.totalorder %s96, %s110
      %p112 = scmp.eq.s32.totalorder %s23, 0
      %p113 = por %p111, %p112
      %s115 = sadd.s32 %s114, 1
      %p118 = scmp.eq.s32.totalorder %s17, 1
      %p119 = scmp.ne.s32.totalorder %s114, %s116
      %p120 = scmp.eq.s32.totalorder %s17, 0
      %p121 = por %p119, %p120
      %p122 = scmp.ne.s32.totalorder %s114, %s116
      %p123 = scmp.eq.s32.totalorder %s22, 1
      %p124 = por %p122, %p123
      %p125 = scmp.ne.s32.totalorder %s116, %s117
      %p126 = scmp.eq.s32.totalorder %s22, 0
      %p127 = por %p125, %p126
      %p128 = scmp.ne.s32.totalorder %s116, %s117
      %p129 = scmp.eq.s32.totalorder %s23, 1
      %p130 = por %p128, %p129
      %p132 = scmp.ne.s32.totalorder %s117, %s131
      %p133 = scmp.eq.s32.totalorder %s23, 0
      %p134 = por %p132, %p133
      %s135 = ssub.s32 %s17, %s24
      %p136 = scmp.eq.s32.totalorder %s135, 0
      %s138 = sadd.s32 %s137, 1
      %s139 = scalar_select %p136, %s137, %s138
      %p142 = pneg %p136
      %p143 = scmp.eq.s32.totalorder %s17, 1
      %p144 = por %p142, %p143
      %p145 = scmp.ne.s32.totalorder %s137, %s140
      %p146 = scmp.eq.s32.totalorder %s17, 0
      %p147 = por %p145, %p146
      %p148 = scmp.ne.s32.totalorder %s137, %s140
      %p149 = scmp.eq.s32.totalorder %s22, 1
      %p150 = por %p148, %p149
      %p151 = scmp.ne.s32.totalorder %s140, %s141
      %p152 = scmp.eq.s32.totalorder %s22, 0
      %p153 = por %p151, %p152
      %p154 = scmp.ne.s32.totalorder %s140, %s141
      %p155 = scmp.eq.s32.totalorder %s23, 1
      %p156 = por %p154, %p155
      %p158 = scmp.ne.s32.totalorder %s141, %s157
      %p159 = scmp.eq.s32.totalorder %s23, 0
      %p160 = por %p158, %p159
      %p161 = scmp.le.s32.totalorder 1, %s17
      %p162 = scmp.lt.s32.totalorder %s17, 3
      %p163 = pnand %p161, %p162
      %p164 = pneg %p163
      // Predicated region
      $region9: #{tpu_custom_call.1} parent=5 // pred_check
        _
      $region10: #{tpu_custom_call.1} parent=5 // pred_check_branch
        %166 = sbr.rel (%p163) target = $region12
      $region11: #{tpu_custom_call.1} parent=5 // pred_region
        %s167 = ssub.s32 %s17, 1
        // Predicated region
        $region13: #{tpu_custom_call.1} parent=11 // pred_check
          %p168 = pneg %p64
        $region14: #{tpu_custom_call.1} parent=11 // pred_check_branch
          %170 = sbr.rel (%p168) target = $region16
        $region15: #{tpu_custom_call.1} parent=11 // pred_region
          _
        $region16: #{tpu_custom_call.1} parent=11 // pred_fallthru
          _
        // Predicated region
        $region17: #{tpu_custom_call.1} parent=11 // pred_check
          %p171 = pneg %p85
        $region18: #{tpu_custom_call.1} parent=11 // pred_check_branch
          %173 = sbr.rel (%p171) target = $region20
        $region19: #{tpu_custom_call.1} parent=11 // pred_region
          _
        $region20: #{tpu_custom_call.1} parent=11 // pred_fallthru
          _
        // Predicated region
        $region21: #{tpu_custom_call.1} parent=11 // pred_check
          %p174 = pneg %p106
        $region22: #{tpu_custom_call.1} parent=11 // pred_check_branch
          %176 = sbr.rel (%p174) target = $region24
        $region23: #{tpu_custom_call.1} parent=11 // pred_region
          _
        $region24: #{tpu_custom_call.1} parent=11 // pred_fallthru
          _
        // Predicated region
        $region25: #{tpu_custom_call.1} parent=11 // pred_check
          %p177 = pneg %p127
        $region26: #{tpu_custom_call.1} parent=11 // pred_check_branch
          %179 = sbr.rel (%p177) target = $region28
        $region27: #{tpu_custom_call.1} parent=11 // pred_region
          _
        $region28: #{tpu_custom_call.1} parent=11 // pred_fallthru
          _
      $region12: #{tpu_custom_call.1} parent=5 // pred_fallthru
        _
      %p180 = scmp.lt.s32.totalorder %s17, 2
      // Predicated region
      $region29: #{tpu_custom_call.1} parent=5 // pred_check
        %p181 = pneg %p180
      $region30: #{tpu_custom_call.1} parent=5 // pred_check_branch
        %183 = sbr.rel (%p181) target = $region32
      $region31: #{tpu_custom_call.1} parent=5 // pred_region
        // Predicated region
        $region33: #{tpu_custom_call.1} parent=31 // pred_check
          %p184 = pneg %p37
        $region34: #{tpu_custom_call.1} parent=31 // pred_check_branch
          %186 = sbr.rel (%p184) target = $region36
        $region35: #{tpu_custom_call.1} parent=31 // pred_region
          %s187 = sand.u32 %s27, 1
          %s188 = scalar_lea.sflag [#allocation3], %s187
          %s189 = sand.u32 %s27, 1
          %s190 = smul.addr %s189, 512
          %s191 = scalar_lea.vmem [#allocation2], %s190
          %s193 = ssub.s32 8192, 8192
          %194 = vsyncadd %s188, %s193
          %s195 = smul.addr %s17, 64
          %s196 = smul.addr %s195, 128
          %s197 = scalar_lea.hbm %s0, %s196
          %s198 = sshll.u32 %s191, 4
          %s199 = int_to_ptr.vmem [resolvable:$true] %s198
          %204 = dma.hbm_to_vmem [thread:$0]  %s197, 8192, %s199, %s188, 1024, 1024, 64
        $region36: #{tpu_custom_call.1} parent=31 // pred_fallthru
          _
      $region32: #{tpu_custom_call.1} parent=5 // pred_fallthru
        _
      %p205 = scmp.le.s32.totalorder 1, %s17
      %p206 = scmp.lt.s32.totalorder %s17, 3
      %p207 = pnand %p205, %p206
      %p208 = pneg %p207
      // Predicated region
      $region37: #{tpu_custom_call.1} parent=5 // pred_check
        _
      $region38: #{tpu_custom_call.1} parent=5 // pred_check_branch
        %210 = sbr.rel (%p207) target = $region40
      $region39: #{tpu_custom_call.1} parent=5 // pred_region
        %s211 = ssub.s32 %s17, 1
        %s212 = sand.u32 %s30, 1
        %s213 = scalar_lea.sflag [#allocation3], %s212
        %s214 = sand.u32 %s30, 1
        %s215 = smul.addr %s214, 512
        %s216 = scalar_lea.vmem [#allocation2], %s215
        // Predicated region
        $region41: #{tpu_custom_call.1} parent=39 // pred_check
          %p217 = pneg %p43
        $region42: #{tpu_custom_call.1} parent=39 // pred_check_branch
          %219 = sbr.rel (%p217) target = $region44
        $region43: #{tpu_custom_call.1} parent=39 // pred_region
          %220 = dma.done %s213, 8192
        $region44: #{tpu_custom_call.1} parent=39 // pred_fallthru
          _
        %s221 = sand.u32 %s30, 1
        %s222 = scalar_lea.sflag [#allocation3], %s221
        %s223 = sand.u32 %s30, 1
        %s224 = smul.addr %s223, 512
        %s225 = scalar_lea.vmem [#allocation2], %s224
        %p226 = pneg %p43
        %p227 = pneg %p40
        %p228 = pneg %p64
        %p229 = pneg %p61
        %p230 = pneg %p85
        %p231 = pneg %p82
        %p232 = pneg %p106
        %p233 = pneg %p103
        %p234 = pneg %p127
        %p235 = pneg %p124
        %p236 = pneg %p153
        %p237 = pneg %p150
        %s238 = sand.u32 %s140, 1
        %s239 = scalar_lea.sflag [#allocation4], %s238
        %s240 = sand.u32 %s140, 1
        %s241 = smul.addr %s240, 512
        %s242 = scalar_lea.vmem [#allocation5], %s241
        loop: start=0, step=1, limit=4
        $region45: #{tpu_custom_call.1} parent=39 // loop_pre_header
          _
        $region46: #{tpu_custom_call.1} parent=39 // loop_header
          %s244 = sphi 0, %s248
          %p245 = scmp.ge.s32.totalorder %s244, 4
          %v249 = vphi 0.0, %v278
          %v250 = vphi 0.0, %v279
          %v251 = vphi 0.0, %v280
          %v252 = vphi 0.0, %v281
          %v253 = vphi 0.0, %v282
          %v254 = vphi 0.0, %v283
          %v255 = vphi 0.0, %v284
          %v256 = vphi 0.0, %v285
          %v257 = vphi 0.0, %v299
          %v258 = vphi 0.0, %v300
          %v259 = vphi 0.0, %v301
          %v260 = vphi 0.0, %v302
          %v261 = vphi 0.0, %v303
          %v262 = vphi 0.0, %v304
          %v263 = vphi 0.0, %v305
          %v264 = vphi 0.0, %v306
        $region47: #{tpu_custom_call.1} parent=39 // loop_header_branch
          %247 = sbr.rel (%p245) target = $region51
        $region48: #{tpu_custom_call.1} parent=39 // loop_body
          %s265 = smul.u32 %s244, 256
          %s266 = sshra.s32 %s265, 7
          %s267 = sand.u32 %s265, 127
          %s268 = smul.addr %s266, 8
          %s269 = scalar_lea.vmem %s216, %s268 [#allocation2]
          %v270 = vld [vmem:[%s269] sm:$0xff]
          %v271 = vld [vmem:[%s269 + $0x40] sm:$0xff]
          %v272 = vld [vmem:[%s269 + $0x80] sm:$0xff]
          %v273 = vld [vmem:[%s269 + $0xc0] sm:$0xff]
          %v274 = vld [vmem:[%s269 + $0x100] sm:$0xff]
          %v275 = vld [vmem:[%s269 + $0x140] sm:$0xff]
          %v276 = vld [vmem:[%s269 + $0x180] sm:$0xff]
          %v277 = vld [vmem:[%s269 + $0x1c0] sm:$0xff]
          %v278 = vadd.f32 %v249, %v270
          %v279 = vadd.f32 %v250, %v271
          %v280 = vadd.f32 %v251, %v272
          %v281 = vadd.f32 %v252, %v273
          %v282 = vadd.f32 %v253, %v274
          %v283 = vadd.f32 %v254, %v275
          %v284 = vadd.f32 %v255, %v276
          %v285 = vadd.f32 %v256, %v277
          %s286 = sadd.s32 %s265, 128
          %s287 = sshra.s32 %s286, 7
          %s288 = sand.u32 %s286, 127
          %s289 = smul.addr %s287, 8
          %s290 = scalar_lea.vmem %s216, %s289 [#allocation2]
          %v291 = vld [vmem:[%s290] sm:$0xff]
          %v292 = vld [vmem:[%s290 + $0x40] sm:$0xff]
          %v293 = vld [vmem:[%s290 + $0x80] sm:$0xff]
          %v294 = vld [vmem:[%s290 + $0xc0] sm:$0xff]
          %v295 = vld [vmem:[%s290 + $0x100] sm:$0xff]
          %v296 = vld [vmem:[%s290 + $0x140] sm:$0xff]
          %v297 = vld [vmem:[%s290 + $0x180] sm:$0xff]
          %v298 = vld [vmem:[%s290 + $0x1c0] sm:$0xff]
          %v299 = vadd.f32 %v257, %v291
          %v300 = vadd.f32 %v258, %v292
          %v301 = vadd.f32 %v259, %v293
          %v302 = vadd.f32 %v260, %v294
          %v303 = vadd.f32 %v261, %v295
          %v304 = vadd.f32 %v262, %v296
          %v305 = vadd.f32 %v263, %v297
          %v306 = vadd.f32 %v264, %v298
        $region49: #{tpu_custom_call.1} parent=39 // loop_footer
          %s248 = sadd.s32 1, %s244
        $region50: #{tpu_custom_call.1} parent=39 // loop_footer_branch
          %243 = sbr.rel target = $region46
        $region51: #{tpu_custom_call.1} parent=39 // loop_exit
          _
        %v307 = vadd.f32 %v249, %v257
        %v308 = vadd.f32 %v250, %v258
        %v309 = vadd.f32 %v251, %v259
        %v310 = vadd.f32 %v252, %v260
        %v311 = vadd.f32 %v253, %v261
        %v312 = vadd.f32 %v254, %v262
        %v313 = vadd.f32 %v255, %v263
        %v314 = vadd.f32 %v256, %v264
        %315 = vadd.xlane.f32.xlu0 %v307
        %v316 = vpop.xlane.xlu0 %315
        %317 = vadd.xlane.f32.xlu0 %v308
        %v318 = vpop.xlane.xlu0 %317
        %319 = vadd.xlane.f32.xlu0 %v309
        %v320 = vpop.xlane.xlu0 %319
        %321 = vadd.xlane.f32.xlu0 %v310
        %v322 = vpop.xlane.xlu0 %321
        %323 = vadd.xlane.f32.xlu0 %v311
        %v324 = vpop.xlane.xlu0 %323
        %325 = vadd.xlane.f32.xlu0 %v312
        %v326 = vpop.xlane.xlu0 %325
        %327 = vadd.xlane.f32.xlu0 %v313
        %v328 = vpop.xlane.xlu0 %327
        %329 = vadd.xlane.f32.xlu0 %v314
        %v330 = vpop.xlane.xlu0 %329
        %v331 = vmul.f32 %v316, 0.0009765625
        %v332 = vmul.f32 %v318, 0.0009765625
        %v333 = vmul.f32 %v320, 0.0009765625
        %v334 = vmul.f32 %v322, 0.0009765625
        %v335 = vmul.f32 %v324, 0.0009765625
        %v336 = vmul.f32 %v326, 0.0009765625
        %v337 = vmul.f32 %v328, 0.0009765625
        %v338 = vmul.f32 %v330, 0.0009765625
        %v339 = vld [vmem:[%s1] sm:$0xff]
        %v340 = vld [vmem:[%s1 + $0x8] sm:$0xff]
        %v341 = vld [vmem:[%s1 + $0x10] sm:$0xff]
        %v342 = vld [vmem:[%s1 + $0x18] sm:$0xff]
        %v343 = vld [vmem:[%s1 + $0x20] sm:$0xff]
        %v344 = vld [vmem:[%s1 + $0x28] sm:$0xff]
        %v345 = vld [vmem:[%s1 + $0x30] sm:$0xff]
        %v346 = vld [vmem:[%s1 + $0x38] sm:$0xff]
        %v347 = vld [vmem:[%s2] sm:$0x1]
        %v348 = vld [vmem:[%s3] sm:$0xff]
        %v349 = vld [vmem:[%s3 + $0x8] sm:$0xff]
        %v350 = vld [vmem:[%s3 + $0x10] sm:$0xff]
        %v351 = vld [vmem:[%s3 + $0x18] sm:$0xff]
        %v352 = vld [vmem:[%s3 + $0x20] sm:$0xff]
        %v353 = vld [vmem:[%s3 + $0x28] sm:$0xff]
        %v354 = vld [vmem:[%s3 + $0x30] sm:$0xff]
        %v355 = vld [vmem:[%s3 + $0x38] sm:$0xff]
        %v356 = vld [vmem:[%s4] sm:$0xff]
        %v357 = vld [vmem:[%s4 + $0x8] sm:$0xff]
        %v358 = vld [vmem:[%s4 + $0x10] sm:$0xff]
        %v359 = vld [vmem:[%s4 + $0x18] sm:$0xff]
        %v360 = vld [vmem:[%s4 + $0x20] sm:$0xff]
        %v361 = vld [vmem:[%s4 + $0x28] sm:$0xff]
        %v362 = vld [vmem:[%s4 + $0x30] sm:$0xff]
        %v363 = vld [vmem:[%s4 + $0x38] sm:$0xff]
        %v364 = vmul.f32 %v339, %v331
        %v365 = vmul.f32 %v340, %v332
        %v366 = vmul.f32 %v341, %v333
        %v367 = vmul.f32 %v342, %v334
        %v368 = vmul.f32 %v343, %v335
        %v369 = vmul.f32 %v344, %v336
        %v370 = vmul.f32 %v345, %v337
        %v371 = vmul.f32 %v346, %v338
        %vm372 = vcmask 31744
        %v373 = vsel %vm372, %v364, 0.0
        %v374 = vsel %vm372, %v365, 0.0
        %v375 = vadd.f32 %v373, %v374
        %v376 = vsel %vm372, %v366, 0.0
        %v377 = vadd.f32 %v375, %v376
        %v378 = vsel %vm372, %v367, 0.0
        %v379 = vadd.f32 %v377, %v378
        %v380 = vsel %vm372, %v368, 0.0
        %v381 = vadd.f32 %v379, %v380
        %v382 = vsel %vm372, %v369, 0.0
        %v383 = vadd.f32 %v381, %v382
        %v384 = vsel %vm372, %v370, 0.0
        %v385 = vadd.f32 %v383, %v384
        %v386 = vsel %vm372, %v371, 0.0
        %v387 = vadd.f32 %v385, %v386
        %v388 = vrot.slane %v387, 4
        %v389 = vadd.f32 %v387, %v388
        %v390 = vrot.slane %v389, 2
        %v391 = vadd.f32 %v389, %v390
        %v392 = vrot.slane %v391, 1
        %v393 = vadd.f32 %v391, %v392
        %v394 = vadd.f32 %v393, %v347
        %vm395 = vcmp.gt.f32.partialorder %v394, 0.0
        %v396 = vmul.f32 %v394, 0.01
        %v397 = vsel %vm395, %v394, %v396
        %v398 = vlaneseq
        %v399 = vshrl.u32 %v398, 7
        %v400 = vsub.s32 0, %v399
        %v401 = vrot.slane %v397, %v400
        %v402 = vmul.f32 %v348, %v401
        %v403 = vmul.f32 %v349, %v401
        %v404 = vmul.f32 %v350, %v401
        %v405 = vmul.f32 %v351, %v401
        %v406 = vmul.f32 %v352, %v401
        %v407 = vmul.f32 %v353, %v401
        %v408 = vmul.f32 %v354, %v401
        %v409 = vmul.f32 %v355, %v401
        %v410 = vsel %vm372, %v402, 0.0
        %411 = vadd.xlane.f32.xlu0 %v410
        %v412 = vpop.xlane.xlu0 %411
        %v413 = vsel %vm372, %v403, 0.0
        %414 = vadd.xlane.f32.xlu0 %v413
        %v415 = vpop.xlane.xlu0 %414
        %v416 = vsel %vm372, %v404, 0.0
        %417 = vadd.xlane.f32.xlu0 %v416
        %v418 = vpop.xlane.xlu0 %417
        %v419 = vsel %vm372, %v405, 0.0
        %420 = vadd.xlane.f32.xlu0 %v419
        %v421 = vpop.xlane.xlu0 %420
        %v422 = vsel %vm372, %v406, 0.0
        %423 = vadd.xlane.f32.xlu0 %v422
        %v424 = vpop.xlane.xlu0 %423
        %v425 = vsel %vm372, %v407, 0.0
        %426 = vadd.xlane.f32.xlu0 %v425
        %v427 = vpop.xlane.xlu0 %426
        %v428 = vsel %vm372, %v408, 0.0
        %429 = vadd.xlane.f32.xlu0 %v428
        %v430 = vpop.xlane.xlu0 %429
        %v431 = vsel %vm372, %v409, 0.0
        %432 = vadd.xlane.f32.xlu0 %v431
        %v433 = vpop.xlane.xlu0 %432
        %v434 = vadd.f32 %v412, %v356
        %v435 = vadd.f32 %v415, %v357
        %v436 = vadd.f32 %v418, %v358
        %v437 = vadd.f32 %v421, %v359
        %v438 = vadd.f32 %v424, %v360
        %v439 = vadd.f32 %v427, %v361
        %v440 = vadd.f32 %v430, %v362
        %v441 = vadd.f32 %v433, %v363
        %v442 = vxor.u32 %v434, 2147483648
        %v443 = vxor.u32 %v435, 2147483648
        %v444 = vxor.u32 %v436, 2147483648
        %v445 = vxor.u32 %v437, 2147483648
        %v446 = vxor.u32 %v438, 2147483648
        %v447 = vxor.u32 %v439, 2147483648
        %v448 = vxor.u32 %v440, 2147483648
        %v449 = vxor.u32 %v441, 2147483648
        %v450 = vmul.f32 %v442, 1.442695
        %v451 = vpow.pop %v450
        %v452 = vmul.f32 %v443, 1.442695
        %v453 = vpow.pop %v452
        %v454 = vmul.f32 %v444, 1.442695
        %v455 = vpow.pop %v454
        %v456 = vmul.f32 %v445, 1.442695
        %v457 = vpow.pop %v456
        %v458 = vmul.f32 %v446, 1.442695
        %v459 = vpow.pop %v458
        %v460 = vmul.f32 %v447, 1.442695
        %v461 = vpow.pop %v460
        %v462 = vmul.f32 %v448, 1.442695
        %v463 = vpow.pop %v462
        %v464 = vmul.f32 %v449, 1.442695
        %v465 = vpow.pop %v464
        %v466 = vadd.f32 %v451, 1.0
        %v467 = vadd.f32 %v453, 1.0
        %v468 = vadd.f32 %v455, 1.0
        %v469 = vadd.f32 %v457, 1.0
        %v470 = vadd.f32 %v459, 1.0
        %v471 = vadd.f32 %v461, 1.0
        %v472 = vadd.f32 %v463, 1.0
        %v473 = vadd.f32 %v465, 1.0
        %v474 = vrcp.pop %v466
        %v475 = vmul.f32 1.0, %v474
        %v476 = vrcp.pop %v467
        %v477 = vmul.f32 1.0, %v476
        %v478 = vrcp.pop %v468
        %v479 = vmul.f32 1.0, %v478
        %v480 = vrcp.pop %v469
        %v481 = vmul.f32 1.0, %v480
        %v482 = vrcp.pop %v470
        %v483 = vmul.f32 1.0, %v482
        %v484 = vrcp.pop %v471
        %v485 = vmul.f32 1.0, %v484
        %v486 = vrcp.pop %v472
        %v487 = vmul.f32 1.0, %v486
        %v488 = vrcp.pop %v473
        %v489 = vmul.f32 1.0, %v488
        %v490 = vld [vmem:[%s216] sm:$0xff]
        %v491 = vld [vmem:[%s216 + $0x8] sm:$0xff]
        %v492 = vld [vmem:[%s216 + $0x10] sm:$0xff]
        %v493 = vld [vmem:[%s216 + $0x18] sm:$0xff]
        %v494 = vld [vmem:[%s216 + $0x20] sm:$0xff]
        %v495 = vld [vmem:[%s216 + $0x28] sm:$0xff]
        %v496 = vld [vmem:[%s216 + $0x30] sm:$0xff]
        %v497 = vld [vmem:[%s216 + $0x38] sm:$0xff]
        %v498 = vld [vmem:[%s216 + $0x40] sm:$0xff]
        %v499 = vld [vmem:[%s216 + $0x48] sm:$0xff]
        %v500 = vld [vmem:[%s216 + $0x50] sm:$0xff]
        %v501 = vld [vmem:[%s216 + $0x58] sm:$0xff]
        %v502 = vld [vmem:[%s216 + $0x60] sm:$0xff]
        %v503 = vld [vmem:[%s216 + $0x68] sm:$0xff]
        %v504 = vld [vmem:[%s216 + $0x70] sm:$0xff]
        %v505 = vld [vmem:[%s216 + $0x78] sm:$0xff]
        %v506 = vld [vmem:[%s216 + $0x80] sm:$0xff]
        %v507 = vld [vmem:[%s216 + $0x88] sm:$0xff]
        %v508 = vld [vmem:[%s216 + $0x90] sm:$0xff]
        %v509 = vld [vmem:[%s216 + $0x98] sm:$0xff]
        %v510 = vld [vmem:[%s216 + $0xa0] sm:$0xff]
        %v511 = vld [vmem:[%s216 + $0xa8] sm:$0xff]
        %v512 = vld [vmem:[%s216 + $0xb0] sm:$0xff]
        %v513 = vld [vmem:[%s216 + $0xb8] sm:$0xff]
        %v514 = vld [vmem:[%s216 + $0xc0] sm:$0xff]
        %v515 = vld [vmem:[%s216 + $0xc8] sm:$0xff]
        %v516 = vld [vmem:[%s216 + $0xd0] sm:$0xff]
        %v517 = vld [vmem:[%s216 + $0xd8] sm:$0xff]
        %v518 = vld [vmem:[%s216 + $0xe0] sm:$0xff]
        %v519 = vld [vmem:[%s216 + $0xe8] sm:$0xff]
        %v520 = vld [vmem:[%s216 + $0xf0] sm:$0xff]
        %v521 = vld [vmem:[%s216 + $0xf8] sm:$0xff]
        %v522 = vld [vmem:[%s216 + $0x100] sm:$0xff]
        %v523 = vld [vmem:[%s216 + $0x108] sm:$0xff]
        %v524 = vld [vmem:[%s216 + $0x110] sm:$0xff]
        %v525 = vld [vmem:[%s216 + $0x118] sm:$0xff]
        %v526 = vld [vmem:[%s216 + $0x120] sm:$0xff]
        %v527 = vld [vmem:[%s216 + $0x128] sm:$0xff]
        %v528 = vld [vmem:[%s216 + $0x130] sm:$0xff]
        %v529 = vld [vmem:[%s216 + $0x138] sm:$0xff]
        %v530 = vld [vmem:[%s216 + $0x140] sm:$0xff]
        %v531 = vld [vmem:[%s216 + $0x148] sm:$0xff]
        %v532 = vld [vmem:[%s216 + $0x150] sm:$0xff]
        %v533 = vld [vmem:[%s216 + $0x158] sm:$0xff]
        %v534 = vld [vmem:[%s216 + $0x160] sm:$0xff]
        %v535 = vld [vmem:[%s216 + $0x168] sm:$0xff]
        %v536 = vld [vmem:[%s216 + $0x170] sm:$0xff]
        %v537 = vld [vmem:[%s216 + $0x178] sm:$0xff]
        %v538 = vld [vmem:[%s216 + $0x180] sm:$0xff]
        %v539 = vld [vmem:[%s216 + $0x188] sm:$0xff]
        %v540 = vld [vmem:[%s216 + $0x190] sm:$0xff]
        %v541 = vld [vmem:[%s216 + $0x198] sm:$0xff]
        %v542 = vld [vmem:[%s216 + $0x1a0] sm:$0xff]
        %v543 = vld [vmem:[%s216 + $0x1a8] sm:$0xff]
        %v544 = vld [vmem:[%s216 + $0x1b0] sm:$0xff]
        %v545 = vld [vmem:[%s216 + $0x1b8] sm:$0xff]
        %v546 = vld [vmem:[%s216 + $0x1c0] sm:$0xff]
        %v547 = vld [vmem:[%s216 + $0x1c8] sm:$0xff]
        %v548 = vld [vmem:[%s216 + $0x1d0] sm:$0xff]
        %v549 = vld [vmem:[%s216 + $0x1d8] sm:$0xff]
        %v550 = vld [vmem:[%s216 + $0x1e0] sm:$0xff]
        %v551 = vld [vmem:[%s216 + $0x1e8] sm:$0xff]
        %v552 = vld [vmem:[%s216 + $0x1f0] sm:$0xff]
        %v553 = vld [vmem:[%s216 + $0x1f8] sm:$0xff]
        %555 = vset.pattern.permute.xlu0 0
        %556 = vperm.xlu0 %555, %v475
        %v557 = vpop.permute.xlu0 %556
        %560 = vset.pattern.permute.xlu0 0
        %561 = vperm.xlu0 %560, %v477
        %v562 = vpop.permute.xlu0 %561
        %565 = vset.pattern.permute.xlu0 0
        %566 = vperm.xlu0 %565, %v479
        %v567 = vpop.permute.xlu0 %566
        %570 = vset.pattern.permute.xlu0 0
        %571 = vperm.xlu0 %570, %v481
        %v572 = vpop.permute.xlu0 %571
        %575 = vset.pattern.permute.xlu0 0
        %576 = vperm.xlu0 %575, %v483
        %v577 = vpop.permute.xlu0 %576
        %580 = vset.pattern.permute.xlu0 0
        %581 = vperm.xlu0 %580, %v485
        %v582 = vpop.permute.xlu0 %581
        %585 = vset.pattern.permute.xlu0 0
        %586 = vperm.xlu0 %585, %v487
        %v587 = vpop.permute.xlu0 %586
        %590 = vset.pattern.permute.xlu0 0
        %591 = vperm.xlu0 %590, %v489
        %v592 = vpop.permute.xlu0 %591
        %v594 = vmul.f32 %v490, %v557
        %v595 = vmul.f32 %v491, %v557
        %v596 = vmul.f32 %v492, %v557
        %v597 = vmul.f32 %v493, %v557
        %v598 = vmul.f32 %v494, %v557
        %v599 = vmul.f32 %v495, %v557
        %v600 = vmul.f32 %v496, %v557
        %v601 = vmul.f32 %v497, %v557
        %v602 = vmul.f32 %v498, %v562
        %v603 = vmul.f32 %v499, %v562
        %v604 = vmul.f32 %v500, %v562
        %v605 = vmul.f32 %v501, %v562
        %v606 = vmul.f32 %v502, %v562
        %v607 = vmul.f32 %v503, %v562
        %v608 = vmul.f32 %v504, %v562
        %v609 = vmul.f32 %v505, %v562
        %v610 = vmul.f32 %v506, %v567
        %v611 = vmul.f32 %v507, %v567
        %v612 = vmul.f32 %v508, %v567
        %v613 = vmul.f32 %v509, %v567
        %v614 = vmul.f32 %v510, %v567
        %v615 = vmul.f32 %v511, %v567
        %v616 = vmul.f32 %v512, %v567
        %v617 = vmul.f32 %v513, %v567
        %v618 = vmul.f32 %v514, %v572
        %v619 = vmul.f32 %v515, %v572
        %v620 = vmul.f32 %v516, %v572
        %v621 = vmul.f32 %v517, %v572
        %v622 = vmul.f32 %v518, %v572
        %v623 = vmul.f32 %v519, %v572
        %v624 = vmul.f32 %v520, %v572
        %v625 = vmul.f32 %v521, %v572
        %v626 = vmul.f32 %v522, %v577
        %v627 = vmul.f32 %v523, %v577
        %v628 = vmul.f32 %v524, %v577
        %v629 = vmul.f32 %v525, %v577
        %v630 = vmul.f32 %v526, %v577
        %v631 = vmul.f32 %v527, %v577
        %v632 = vmul.f32 %v528, %v577
        %v633 = vmul.f32 %v529, %v577
        %v634 = vmul.f32 %v530, %v582
        %v635 = vmul.f32 %v531, %v582
        %v636 = vmul.f32 %v532, %v582
        %v637 = vmul.f32 %v533, %v582
        %v638 = vmul.f32 %v534, %v582
        %v639 = vmul.f32 %v535, %v582
        %v640 = vmul.f32 %v536, %v582
        %v641 = vmul.f32 %v537, %v582
        %v642 = vmul.f32 %v538, %v587
        %v643 = vmul.f32 %v539, %v587
        %v644 = vmul.f32 %v540, %v587
        %v645 = vmul.f32 %v541, %v587
        %v646 = vmul.f32 %v542, %v587
        %v647 = vmul.f32 %v543, %v587
        %v648 = vmul.f32 %v544, %v587
        %v649 = vmul.f32 %v545, %v587
        %v650 = vmul.f32 %v546, %v592
        %v651 = vmul.f32 %v547, %v592
        %v652 = vmul.f32 %v548, %v592
        %v653 = vmul.f32 %v549, %v592
        %v654 = vmul.f32 %v550, %v592
        %v655 = vmul.f32 %v551, %v592
        %v656 = vmul.f32 %v552, %v592
        %v657 = vmul.f32 %v553, %v592
        %658 = vst [vmem:[%s242] sm:$0xff] %v594
        %659 = vst [vmem:[%s242 + $0x8] sm:$0xff] %v595
        %660 = vst [vmem:[%s242 + $0x10] sm:$0xff] %v596
        %661 = vst [vmem:[%s242 + $0x18] sm:$0xff] %v597
        %662 = vst [vmem:[%s242 + $0x20] sm:$0xff] %v598
        %663 = vst [vmem:[%s242 + $0x28] sm:$0xff] %v599
        %664 = vst [vmem:[%s242 + $0x30] sm:$0xff] %v600
        %665 = vst [vmem:[%s242 + $0x38] sm:$0xff] %v601
        %666 = vst [vmem:[%s242 + $0x40] sm:$0xff] %v602
        %667 = vst [vmem:[%s242 + $0x48] sm:$0xff] %v603
        %668 = vst [vmem:[%s242 + $0x50] sm:$0xff] %v604
        %669 = vst [vmem:[%s242 + $0x58] sm:$0xff] %v605
        %670 = vst [vmem:[%s242 + $0x60] sm:$0xff] %v606
        %671 = vst [vmem:[%s242 + $0x68] sm:$0xff] %v607
        %672 = vst [vmem:[%s242 + $0x70] sm:$0xff] %v608
        %673 = vst [vmem:[%s242 + $0x78] sm:$0xff] %v609
        %674 = vst [vmem:[%s242 + $0x80] sm:$0xff] %v610
        %675 = vst [vmem:[%s242 + $0x88] sm:$0xff] %v611
        %676 = vst [vmem:[%s242 + $0x90] sm:$0xff] %v612
        %677 = vst [vmem:[%s242 + $0x98] sm:$0xff] %v613
        %678 = vst [vmem:[%s242 + $0xa0] sm:$0xff] %v614
        %679 = vst [vmem:[%s242 + $0xa8] sm:$0xff] %v615
        %680 = vst [vmem:[%s242 + $0xb0] sm:$0xff] %v616
        %681 = vst [vmem:[%s242 + $0xb8] sm:$0xff] %v617
        %682 = vst [vmem:[%s242 + $0xc0] sm:$0xff] %v618
        %683 = vst [vmem:[%s242 + $0xc8] sm:$0xff] %v619
        %684 = vst [vmem:[%s242 + $0xd0] sm:$0xff] %v620
        %685 = vst [vmem:[%s242 + $0xd8] sm:$0xff] %v621
        %686 = vst [vmem:[%s242 + $0xe0] sm:$0xff] %v622
        %687 = vst [vmem:[%s242 + $0xe8] sm:$0xff] %v623
        %688 = vst [vmem:[%s242 + $0xf0] sm:$0xff] %v624
        %689 = vst [vmem:[%s242 + $0xf8] sm:$0xff] %v625
        %690 = vst [vmem:[%s242 + $0x100] sm:$0xff] %v626
        %691 = vst [vmem:[%s242 + $0x108] sm:$0xff] %v627
        %692 = vst [vmem:[%s242 + $0x110] sm:$0xff] %v628
        %693 = vst [vmem:[%s242 + $0x118] sm:$0xff] %v629
        %694 = vst [vmem:[%s242 + $0x120] sm:$0xff] %v630
        %695 = vst [vmem:[%s242 + $0x128] sm:$0xff] %v631
        %696 = vst [vmem:[%s242 + $0x130] sm:$0xff] %v632
        %697 = vst [vmem:[%s242 + $0x138] sm:$0xff] %v633
        %698 = vst [vmem:[%s242 + $0x140] sm:$0xff] %v634
        %699 = vst [vmem:[%s242 + $0x148] sm:$0xff] %v635
        %700 = vst [vmem:[%s242 + $0x150] sm:$0xff] %v636
        %701 = vst [vmem:[%s242 + $0x158] sm:$0xff] %v637
        %702 = vst [vmem:[%s242 + $0x160] sm:$0xff] %v638
        %703 = vst [vmem:[%s242 + $0x168] sm:$0xff] %v639
        %704 = vst [vmem:[%s242 + $0x170] sm:$0xff] %v640
        %705 = vst [vmem:[%s242 + $0x178] sm:$0xff] %v641
        %706 = vst [vmem:[%s242 + $0x180] sm:$0xff] %v642
        %707 = vst [vmem:[%s242 + $0x188] sm:$0xff] %v643
        %708 = vst [vmem:[%s242 + $0x190] sm:$0xff] %v644
        %709 = vst [vmem:[%s242 + $0x198] sm:$0xff] %v645
        %710 = vst [vmem:[%s242 + $0x1a0] sm:$0xff] %v646
        %711 = vst [vmem:[%s242 + $0x1a8] sm:$0xff] %v647
        %712 = vst [vmem:[%s242 + $0x1b0] sm:$0xff] %v648
        %713 = vst [vmem:[%s242 + $0x1b8] sm:$0xff] %v649
        %714 = vst [vmem:[%s242 + $0x1c0] sm:$0xff] %v650
        %715 = vst [vmem:[%s242 + $0x1c8] sm:$0xff] %v651
        %716 = vst [vmem:[%s242 + $0x1d0] sm:$0xff] %v652
        %717 = vst [vmem:[%s242 + $0x1d8] sm:$0xff] %v653
        %718 = vst [vmem:[%s242 + $0x1e0] sm:$0xff] %v654
        %719 = vst [vmem:[%s242 + $0x1e8] sm:$0xff] %v655
        %720 = vst [vmem:[%s242 + $0x1f0] sm:$0xff] %v656
        %721 = vst [vmem:[%s242 + $0x1f8] sm:$0xff] %v657
        %s722 = sand.u32 %s140, 1
        %s723 = scalar_lea.sflag [#allocation4], %s722
        %s724 = sand.u32 %s140, 1
        %s725 = smul.addr %s724, 512
        %s726 = scalar_lea.vmem [#allocation5], %s725
        // Predicated region
        $region52: #{tpu_custom_call.1} parent=39 // pred_check
          %p727 = pneg %p150
        $region53: #{tpu_custom_call.1} parent=39 // pred_check_branch
          %729 = sbr.rel (%p727) target = $region55
        $region54: #{tpu_custom_call.1} parent=39 // pred_region
          %s731 = ssub.s32 8192, 8192
          %732 = vsyncadd %s723, %s731
          %s733 = smul.addr %s22, 64
          %s734 = smul.addr %s733, 128
          %s735 = scalar_lea.hbm %s5, %s734
          %s736 = sshll.u32 %s726, 4
          %s737 = int_to_ptr.vmem [resolvable:$true] %s736
          %742 = dma.vmem_to_hbm [thread:$0]  %s737, 8192, %s735, %s723, 1024, 1024, 64
        $region55: #{tpu_custom_call.1} parent=39 // pred_fallthru
          _
      $region40: #{tpu_custom_call.1} parent=5 // pred_fallthru
        _
      %p743 = scmp.le.s32.totalorder 2, %s17
      // Predicated region
      $region56: #{tpu_custom_call.1} parent=5 // pred_check
        %p744 = pneg %p743
      $region57: #{tpu_custom_call.1} parent=5 // pred_check_branch
        %746 = sbr.rel (%p744) target = $region59
      $region58: #{tpu_custom_call.1} parent=5 // pred_region
        %s747 = ssub.s32 %s17, 2
        // Predicated region
        $region60: #{tpu_custom_call.1} parent=58 // pred_check
          %p748 = pneg %p156
        $region61: #{tpu_custom_call.1} parent=58 // pred_check_branch
          %750 = sbr.rel (%p748) target = $region63
        $region62: #{tpu_custom_call.1} parent=58 // pred_region
          %s751 = sand.u32 %s141, 1
          %s752 = scalar_lea.sflag [#allocation4], %s751
          %s753 = sand.u32 %s141, 1
          %s754 = smul.addr %s753, 512
          %s755 = scalar_lea.vmem [#allocation5], %s754
          %756 = dma.done %s752, 8192
        $region63: #{tpu_custom_call.1} parent=58 // pred_fallthru
          _
      $region59: #{tpu_custom_call.1} parent=5 // pred_fallthru
        _
    $region6: #{tpu_custom_call.1} parent=1 // loop_footer
      %s21 = sadd.s32 1, %s17
    $region7: #{tpu_custom_call.1} parent=1 // loop_footer_branch
      %16 = sbr.rel target = $region3
    $region8: #{tpu_custom_call.1} parent=1 // loop_exit
      _
    %757 = vsyncpa [#allocation3], 1
    %s758 = scalar_lea.sflag [#allocation3], 1
    %759 = vsyncpa %s758, 1
    %760 = vsyncpa [#allocation4], 1
    %s761 = scalar_lea.sflag [#allocation4], 1
    %762 = vsyncpa %s761, 1

</llo_original>
